<compile_context>
chip_gen: v6e
topology: v6e:2x2x1
jax: 0.10.0
libtpu: 0.0.40
codegen_flags: <defaults>
</compile_context>

<pallas_src>
import jax
import jax.numpy as jnp
from jax.experimental import pallas as pl
from jax.experimental.pallas import tpu as pltpu


def _round_up(n: int, m: int) -> int:
    return ((n + m - 1) // m) * m


def _pad2d(a, target_shape):
    pads = [(0, t - s) for s, t in zip(a.shape, target_shape)]
    if all(p == (0, 0) for p in pads):
        return a
    return jnp.pad(a, pads)


# ---------------------------------------------------------------------------
# Kernel body
# ---------------------------------------------------------------------------
def ffn_kernel(x_ref, w1_ref, w2_ref, o_ref, acc_ref):
    # x_ref : (tm, d_embed_p)   row tile, resident across k
    # w1_ref: (d_embed_p, tk)   hidden-dim slice of W1
    # w2_ref: (tk, d_embed_p)   hidden-dim slice of W2
    # o_ref : (tm, d_embed_p)   same block for every k (accumulator output)
    # acc_ref: VMEM (tm, d_embed_p) f32 scratch
    k = pl.program_id(1)

    # First matmul: bf16 operands, f32 accumulation; ReLU on the f32 result.
    # The hidden (k) split is exact: each step contracts the full d_embed.
    h = jnp.dot(x_ref[...], w1_ref[...], preferred_element_type=jnp.float32)
    h = jnp.maximum(h, 0.0)

    # Second matmul on this hidden slice, f32 accumulation.
    part = jnp.dot(h.astype(w2_ref.dtype), w2_ref[...],
                   preferred_element_type=jnp.float32)

    @pl.when(k == 0)
    def _():
        acc_ref[...] = part            # assign-on-first-k: no zero-init store

    @pl.when(k > 0)
    def _():
        acc_ref[...] += part

    @pl.when(k == pl.num_programs(1) - 1)
    def _():
        o_ref[...] = acc_ref[...].astype(o_ref.dtype)


# ---------------------------------------------------------------------------
# VMEM budgeting / tile selection
# ---------------------------------------------------------------------------
def _physical_vmem_bytes() -> int:
    try:
        info = pltpu.get_tpu_info()
        cap = getattr(info, "vmem_capacity_bytes", None)
        if cap:
            return int(cap)
    except Exception:
        pass
    return 64 * 1024 * 1024            # conservative fallback (v7x per-TC VMEM)


def _default_vmem_limit() -> int:
    # Leave 16 MiB headroom for Mosaic-internal scratch -> ~112 MiB on v5e/v6e,
    # ~48 MiB on v7x.
    return max(_physical_vmem_bytes() - 16 * 1024 * 1024, 32 * 1024 * 1024)


def _vmem_bytes(tm, tk, d_embed_p, weight_bufs, in_itemsize, out_itemsize):
    x_bytes = 2 * tm * d_embed_p * in_itemsize                 # double-buffered x
    w_bytes = weight_bufs * d_embed_p * tk * in_itemsize * 2   # W1 + W2 slices
    o_bytes = 2 * tm * d_embed_p * out_itemsize                # double-buffered out
    acc_bytes = tm * d_embed_p * 4                             # f32 accumulator
    h_bytes = tm * tk * (4 + in_itemsize)                      # f32 h + bf16 cast copy
    return x_bytes + w_bytes + o_bytes + acc_bytes + h_bytes


def _choose_tiles(m, d_embed_p, d_hidden_p, tm_req, tk_req,
                  in_itemsize, out_itemsize, weight_buffers, vmem_budget):
    # Row tile: 256-aligned for the 2x256x256 MXU when large; 16-aligned (bf16
    # sublane packing) when the whole problem is smaller than one tile.
    tm = min(_round_up(tm_req, 256), _round_up(m, 16))

    # Hidden tile: largest multiple of 256 <= tk_req that divides d_hidden_p
    # (d_hidden_p is a multiple of 256, so 256 always works).
    tk = min(_round_up(tk_req, 256), d_hidden_p)
    while tk > 256 and d_hidden_p % tk != 0:
        tk -= 256

    nbuf = max(2, int(weight_buffers))
    while _vmem_bytes(tm, tk, d_embed_p, nbuf, in_itemsize, out_itemsize) > vmem_budget:
        if nbuf > 2:
            nbuf = 2                   # drop deep weight buffering first
        elif tk > 256:
            tk = 256                   # then shrink the hidden tile
        elif tm > 256:
            tm = max(256, (tm // 32) * 16)   # then halve tm (keep 16-aligned)
        else:
            # TODO(synk): add an output-column (d_embed) grid axis so very large
            # d_embed fits v7x's 64 MiB VMEM without shrinking tm.
            break
    return tm, tk, nbuf


def _weight_spec(shape, index_map, nbuf):
    if nbuf <= 2:
        return pl.BlockSpec(shape, index_map)
    try:
        return pl.BlockSpec(shape, index_map, pipeline_mode=pl.Buffered(nbuf))
    except TypeError:                  # pipeline_mode not supported -> default buffering
        return pl.BlockSpec(shape, index_map)


# ---------------------------------------------------------------------------
# Weight preparation (do ONCE, outside the per-call hot path)
# ---------------------------------------------------------------------------
def prepare_ffn_weights(w1, w2, *, compute_dtype=jnp.bfloat16):
    """Cast to the MXU dtype and zero-pad to 256-aligned shapes (exact for this FFN)."""
    d_embed, d_hidden = w1.shape
    assert w2.shape == (d_hidden, d_embed)
    d_embed_p = _round_up(d_embed, 256)    # 256-wide MXU columns (v6e/v7x); fine on v5e
    d_hidden_p = _round_up(d_hidden, 256)
    w1p = _pad2d(w1.astype(compute_dtype), (d_embed_p, d_hidden_p))
    w2p = _pad2d(w2.astype(compute_dtype), (d_hidden_p, d_embed_p))
    return w1p, w2p


# ---------------------------------------------------------------------------
# Forward pass
# ---------------------------------------------------------------------------
def position_wise_ffn(x, w1p, w2p, *, tm=512, tk=512,
                      compute_dtype=jnp.bfloat16, out_dtype=None,
                      weight_buffers=2, vmem_limit_bytes=None):
    """relu(x @ W1) @ W2 with pre-prepared (cast + 256-padded) weights.

    x:   (batch, seq, d_embed)
    w1p: (d_embed_p, d_hidden_p)  from prepare_ffn_weights
    w2p: (d_hidden_p, d_embed_p)  from prepare_ffn_weights

    out_dtype defaults to x.dtype (matches the PyTorch module); pass
    out_dtype=jnp.bfloat16 to halve the output HBM writeback and output VMEM.
    weight_buffers=3 (pl.Buffered) can help hide weight DMA jitter on v5e.
    """
    batch, seq, d_embed = x.shape
    d_embed_p, d_hidden_p = w1p.shape
    assert w2p.shape == (d_hidden_p, d_embed_p)
    assert d_embed_p >= d_embed and d_embed_p % 256 == 0 and d_hidden_p % 256 == 0, \
        "weights must come from prepare_ffn_weights"
    out_dtype = out_dtype or x.dtype

    if w1p.dtype != compute_dtype:
        w1p = w1p.astype(compute_dtype)
    if w2p.dtype != compute_dtype:
        w2p = w2p.astype(compute_dtype)

    in_itemsize = jnp.dtype(compute_dtype).itemsize
    out_itemsize = jnp.dtype(out_dtype).itemsize

    vmem_limit = vmem_limit_bytes or _default_vmem_limit()
    m = batch * seq
    tm_eff, tk_eff, nbuf = _choose_tiles(
        m, d_embed_p, d_hidden_p, tm, tk,
        in_itemsize, out_itemsize, weight_buffers,
        vmem_budget=int(0.9 * vmem_limit))

    # Per-call x prep only (weights were prepared once): cast + pad rows/cols.
    m_p = _round_up(m, tm_eff)
    x2d = _pad2d(x.reshape(m, d_embed).astype(compute_dtype), (m_p, d_embed_p))

    num_row_tiles = m_p // tm_eff
    grid = (num_row_tiles, d_hidden_p // tk_eff)

    cost = pl.CostEstimate(
        flops=2 * m_p * d_embed_p * d_hidden_p * 2,          # two matmuls
        transcendentals=0,
        bytes_accessed=(m_p * d_embed_p * in_itemsize                       # x read
                        + num_row_tiles * 2 * d_embed_p * d_hidden_p * in_itemsize
                        # ^ W1+W2 re-streamed once per row tile
                        + m_p * d_embed_p * out_itemsize),                  # out write
    )

    out2d = pl.pallas_call(
        ffn_kernel,
        out_shape=jax.ShapeDtypeStruct((m_p, d_embed_p), out_dtype),
        grid_spec=pltpu.PrefetchScalarGridSpec(
            num_scalar_prefetch=0,
            grid=grid,
            in_specs=[
                pl.BlockSpec((tm_eff, d_embed_p), lambda i, k: (i, 0)),      # x row tile
                _weight_spec((d_embed_p, tk_eff), lambda i, k: (0, k), nbuf),  # W1 k-slice
                _weight_spec((tk_eff, d_embed_p), lambda i, k: (k, 0), nbuf),  # W2 k-slice
            ],
            out_specs=pl.BlockSpec((tm_eff, d_embed_p), lambda i, k: (i, 0)),
            scratch_shapes=[pltpu.VMEM((tm_eff, d_embed_p), jnp.float32)],
        ),
        compiler_params=pltpu.CompilerParams(
            dimension_semantics=("parallel", "arbitrary"),
            vmem_limit_bytes=int(vmem_limit),
        ),
        cost_estimate=cost,
    )(x2d, w1p, w2p)

    # Strip padding and restore (batch, seq, d_embed).
    return out2d[:m, :d_embed].reshape(batch, seq, d_embed)


if __name__ == "__main__":
    # Small shapes consistent with the module: batch=2, seq=8, d_embed=32 -> hidden=128.
    batch, seq, d_embed = 2, 8, 32
    d_hidden = 4 * d_embed

    key = jax.random.PRNGKey(0)
    kx, k1, k2 = jax.random.split(key, 3)

    x = jax.random.normal(kx, (batch, seq, d_embed), dtype=jnp.float32)
    # Deterministic synthetic weights; stored as (in, out) = PyTorch weight.T
    w1 = jax.random.normal(k1, (d_embed, d_hidden), dtype=jnp.float32) * (1.0 / jnp.sqrt(d_embed))
    w2 = jax.random.normal(k2, (d_hidden, d_embed), dtype=jnp.float32) * (1.0 / jnp.sqrt(d_hidden))

    # Hoisted out of the hot path: cast + pad weights ONCE.
    w1p, w2p = prepare_ffn_weights(w1, w2)

    out = position_wise_ffn(x, w1p, w2p)
    out = jax.block_until_ready(out)
    assert out.shape == x.shape

    # Reference with matching numerics: bf16 MXU operands, f32 accumulation.
    xb, w1b, w2b = (a.astype(jnp.bfloat16) for a in (x, w1, w2))
    h_ref = jnp.maximum(
        jnp.einsum("bsd,dh->bsh", xb, w1b, preferred_element_type=jnp.float32), 0.0)
    ref = jnp.einsum("bsh,hd->bsd", h_ref.astype(jnp.bfloat16), w2b,
                     preferred_element_type=jnp.float32).astype(x.dtype)
    assert jnp.allclose(out, ref, atol=1e-2, rtol=1e-2)

    # Sanity check against pure-f32 PyTorch semantics (loose tol due to bf16 operands).
    ref_f32 = jnp.maximum(x @ w1, 0.0) @ w2
    assert jnp.allclose(out, ref_f32, atol=5e-1, rtol=5e-2)

    print("KERNEL_OK")
</pallas_src>

<mosaic_0001>
module attributes {stable_mosaic.version = 11 : i64} {
  func.func @ffn_kernel(%arg0: i32, %arg1: i32, %arg2: memref<16x256xbf16, #tpu.memory_space<vmem>>, %arg3: memref<256x256xbf16, #tpu.memory_space<vmem>>, %arg4: memref<256x256xbf16, #tpu.memory_space<vmem>>, %arg5: memref<16x256xf32, #tpu.memory_space<vmem>>, %arg6: memref<16x256xf32, #tpu.memory_space<vmem>>) attributes {dimension_semantics = [#tpu.dimension_semantics<parallel>, #tpu.dimension_semantics<arbitrary>], iteration_bounds = array<i64: 1, 1>, scalar_prefetch = 0 : i64, scratch_operands = 1 : i64, tpu.core_type = #tpu.core_type<tc>, window_params = [{transform_indices = @transform_0, window_bounds = array<i64: 16, 256>}, {transform_indices = @transform_1, window_bounds = array<i64: 256, 256>}, {transform_indices = @transform_2, window_bounds = array<i64: 256, 256>}, {transform_indices = @transform_3, window_bounds = array<i64: 16, 256>}]} {
    %c0 = arith.constant 0 : index
    %c0_0 = arith.constant 0 : index
    %0 = vector.load %arg2[%c0, %c0_0] : memref<16x256xbf16, #tpu.memory_space<vmem>>, vector<16x256xbf16>
    %c0_1 = arith.constant 0 : index
    %c0_2 = arith.constant 0 : index
    %1 = vector.load %arg3[%c0_1, %c0_2] : memref<256x256xbf16, #tpu.memory_space<vmem>>, vector<256x256xbf16>
    %cst = arith.constant dense<0.000000e+00> : vector<16x256xf32>
    %2 = tpu.matmul %0, %1, %cst {dimension_numbers = #tpu.dot_dimension_numbers<[1], [0], [0], [1], [0, 0, 1, 1], [], []>} : vector<16x256xbf16>, vector<256x256xbf16>, vector<16x256xf32> -> vector<16x256xf32>
    %cst_3 = arith.constant 0.000000e+00 : f32
    %3 = vector.broadcast %cst_3 : f32 to vector<16x256xf32>
    %4 = arith.maximumf %2, %3 : vector<16x256xf32>
    %5 = arith.truncf %4 : vector<16x256xf32> to vector<16x256xbf16>
    %c0_4 = arith.constant 0 : index
    %c0_5 = arith.constant 0 : index
    %6 = vector.load %arg4[%c0_4, %c0_5] : memref<256x256xbf16, #tpu.memory_space<vmem>>, vector<256x256xbf16>
    %cst_6 = arith.constant dense<0.000000e+00> : vector<16x256xf32>
    %7 = tpu.matmul %5, %6, %cst_6 {dimension_numbers = #tpu.dot_dimension_numbers<[1], [0], [0], [1], [0, 0, 1, 1], [], []>} : vector<16x256xbf16>, vector<256x256xbf16>, vector<16x256xf32> -> vector<16x256xf32>
    %c0_i32 = arith.constant 0 : i32
    %8 = arith.cmpi eq, %arg1, %c0_i32 : i32
    %9 = arith.extui %8 : i1 to i32
    %c0_i32_7 = arith.constant 0 : i32
    %10 = arith.cmpi ne, %9, %c0_i32_7 : i32
    scf.if %10 {
      %c0_12 = arith.constant 0 : index
      %c0_13 = arith.constant 0 : index
      %17 = vector.load %arg6[%c0_12, %c0_13] : memref<16x256xf32, #tpu.memory_space<vmem>>, vector<16x256xf32>
      tpu.vector_store %arg6[%c0_12, %c0_13], %7 {strides = array<i32>} : memref<16x256xf32, #tpu.memory_space<vmem>>, vector<16x256xf32>,
    } else {
    }
    %c0_i32_8 = arith.constant 0 : i32
    %11 = arith.cmpi sgt, %arg1, %c0_i32_8 : i32
    %12 = arith.extui %11 : i1 to i32
    %c0_i32_9 = arith.constant 0 : i32
    %13 = arith.cmpi ne, %12, %c0_i32_9 : i32
    scf.if %13 {
      %c0_12 = arith.constant 0 : index
      %c0_13 = arith.constant 0 : index
      %17 = vector.load %arg6[%c0_12, %c0_13] : memref<16x256xf32, #tpu.memory_space<vmem>>, vector<16x256xf32>
      %18 = arith.addf %17, %7 : vector<16x256xf32>
      %c0_14 = arith.constant 0 : index
      %c0_15 = arith.constant 0 : index
      %19 = vector.load %arg6[%c0_14, %c0_15] : memref<16x256xf32, #tpu.memory_space<vmem>>, vector<16x256xf32>
      tpu.vector_store %arg6[%c0_14, %c0_15], %18 {strides = array<i32>} : memref<16x256xf32, #tpu.memory_space<vmem>>, vector<16x256xf32>,
    } else {
    }
    %c0_i32_10 = arith.constant 0 : i32
    %14 = arith.cmpi eq, %arg1, %c0_i32_10 : i32
    %15 = arith.extui %14 : i1 to i32
    %c0_i32_11 = arith.constant 0 : i32
    %16 = arith.cmpi ne, %15, %c0_i32_11 : i32
    scf.if %16 {
      %c0_12 = arith.constant 0 : index
      %c0_13 = arith.constant 0 : index
      %17 = vector.load %arg6[%c0_12, %c0_13] : memref<16x256xf32, #tpu.memory_space<vmem>>, vector<16x256xf32>
      %c0_14 = arith.constant 0 : index
      %c0_15 = arith.constant 0 : index
      %18 = vector.load %arg5[%c0_14, %c0_15] : memref<16x256xf32, #tpu.memory_space<vmem>>, vector<16x256xf32>
      tpu.vector_store %arg5[%c0_14, %c0_15], %17 {strides = array<i32>} : memref<16x256xf32, #tpu.memory_space<vmem>>, vector<16x256xf32>,
    } else {
    }
    return
  }
  func.func @transform_0(%arg0: i32, %arg1: i32) -> (i32, i32) {
    %c0_i32 = arith.constant 0 : i32
    %c0_i32_0 = arith.constant 0 : i32
    return %arg0, %c0_i32 : i32, i32
  }
  func.func @transform_1(%arg0: i32, %arg1: i32) -> (i32, i32) {
    %c0_i32 = arith.constant 0 : i32
    %c0_i32_0 = arith.constant 0 : i32
    return %c0_i32, %arg1 : i32, i32
  }
  func.func @transform_2(%arg0: i32, %arg1: i32) -> (i32, i32) {
    %c0_i32 = arith.constant 0 : i32
    %c0_i32_0 = arith.constant 0 : i32
    return %arg1, %c0_i32 : i32, i32
  }
  func.func @transform_3(%arg0: i32, %arg1: i32) -> (i32, i32) {
    %c0_i32 = arith.constant 0 : i32
    %c0_i32_0 = arith.constant 0 : i32
    return %arg0, %c0_i32 : i32, i32
  }
}

</mosaic_0001>

<llo_original>
// kernel: tpu_custom_call.1
$region0: #{tpu_custom_call.1}
  #allocation0 [shape = 'u32[]', space=smem, size = 0x4, offset = 0x4, fixed_abs, tag = 'smem constant byte address 0x4 - core index']
  #allocation1 [shape = 'u32[144,128]{1,0:T(1,128)}', space=vmem, size = 0x12000, scoped, tag = 'internal scratch']
  #allocation2 [shape = 'f32[16,256]{1,0:T(8,128)}', space=vmem, size = 0x4000, scoped, tag = 'scratch operand']
  %s0 = inlined_call_operand.hbm [shape: bf16[16,256], index: 0, kind: input, shape index: {}]
  %s1 = inlined_call_operand.hbm [shape: bf16[256,256], index: 1, kind: input, shape index: {}]
  %s2 = inlined_call_operand.hbm [shape: bf16[256,256], index: 2, kind: input, shape index: {}]
  %s3 = inlined_call_operand.hbm [shape: f32[16,256], index: 3, kind: output, shape index: {}]
  %s4 = sld [smem:[#allocation0]]
  $region46: #{tpu_custom_call.1} parent=0
    _
  %s6 = ssub.s32 1, %s4
  %s7 = scalar_select 0, %s6, %s4
  $region1: #{tpu_custom_call.1} parent=0
    #allocation3 [shape = 'u8[8192]{0}', space=vmem, size = 0x2000, scoped, tag = 'input window, operand 0, single buffered']
    #allocation4 [shape = 's32[1]{0}', space=sflag, size = 0x4, scoped, tag = 'scoped memory for tpu_custom_call.1']
    #allocation5 [shape = 's32[1]{0}', space=sflag, size = 0x4, scoped, tag = 'scoped memory for tpu_custom_call.1']
    #allocation6 [shape = 'u8[131072]{0}', space=vmem, size = 0x20000, scoped, tag = 'input window, operand 1, single buffered']
    #allocation7 [shape = 's32[1]{0}', space=sflag, size = 0x4, scoped, tag = 'scoped memory for tpu_custom_call.1']
    #allocation8 [shape = 'u8[131072]{0}', space=vmem, size = 0x20000, scoped, tag = 'input window, operand 2, single buffered']
    #allocation9 [shape = 'u8[16384]{0}', space=vmem, size = 0x4000, scoped, tag = 'output window, operand 0, single buffered']
    %8 = vsyncpa [#allocation4], 0
    %9 = vsyncpa [#allocation7], 0
    %10 = vsyncpa [#allocation5], 0
    // Predicated region
    $region2: #{tpu_custom_call.1} parent=1 // pred_check
      _
    $region3: #{tpu_custom_call.1} parent=1 // pred_check_branch
      %12 = sbr.rel (0) target = $region5
    $region4: #{tpu_custom_call.1} parent=1 // pred_region
      %s14 = ssub.s32 256, 256
      %15 = vsyncadd [#allocation4], %s14
      %s16 = sshll.u32 [#allocation3], 4
      %s17 = int_to_ptr.vmem [resolvable:$true] %s16
      %22 = dma.hbm_to_vmem [thread:$0]  %s0, 256, %s17, [#allocation4], 128, 128, 8
    $region5: #{tpu_custom_call.1} parent=1 // pred_fallthru
      _
    // Predicated region
    $region6: #{tpu_custom_call.1} parent=1 // pred_check
      _
    $region7: #{tpu_custom_call.1} parent=1 // pred_check_branch
      %24 = sbr.rel (0) target = $region9
    $region8: #{tpu_custom_call.1} parent=1 // pred_region
      %s26 = ssub.s32 4096, 4096
      %27 = vsyncadd [#allocation7], %s26
      %s28 = sshll.u32 [#allocation6], 4
      %s29 = int_to_ptr.vmem [resolvable:$true] %s28
      %34 = dma.hbm_to_vmem [thread:$0]  %s1, 4096, %s29, [#allocation7], 128, 128, 8
    $region9: #{tpu_custom_call.1} parent=1 // pred_fallthru
      _
    // Predicated region
    $region10: #{tpu_custom_call.1} parent=1 // pred_check
      _
    $region11: #{tpu_custom_call.1} parent=1 // pred_check_branch
      %36 = sbr.rel (0) target = $region13
    $region12: #{tpu_custom_call.1} parent=1 // pred_region
      %s38 = ssub.s32 4096, 4096
      %39 = vsyncadd [#allocation7], %s38
      %s40 = sshll.u32 [#allocation8], 4
      %s41 = int_to_ptr.vmem [resolvable:$true] %s40
      %46 = dma.hbm_to_vmem [thread:$0]  %s2, 4096, %s41, [#allocation7], 128, 128, 8
    $region13: #{tpu_custom_call.1} parent=1 // pred_fallthru
      _
    // Predicated region
    $region14: #{tpu_custom_call.1} parent=1 // pred_check
      _
    $region15: #{tpu_custom_call.1} parent=1 // pred_check_branch
      %48 = sbr.rel (0) target = $region17
    $region16: #{tpu_custom_call.1} parent=1 // pred_region
      %49 = dma.done [#allocation4], 256
    $region17: #{tpu_custom_call.1} parent=1 // pred_fallthru
      _
    // Predicated region
    $region18: #{tpu_custom_call.1} parent=1 // pred_check
      _
    $region19: #{tpu_custom_call.1} parent=1 // pred_check_branch
      %51 = sbr.rel (0) target = $region21
    $region20: #{tpu_custom_call.1} parent=1 // pred_region
      %52 = dma.done [#allocation7], 4096
    $region21: #{tpu_custom_call.1} parent=1 // pred_fallthru
      _
    // Predicated region
    $region22: #{tpu_custom_call.1} parent=1 // pred_check
      _
    $region23: #{tpu_custom_call.1} parent=1 // pred_check_branch
      %54 = sbr.rel (0) target = $region25
    $region24: #{tpu_custom_call.1} parent=1 // pred_region
      %55 = dma.done [#allocation7], 4096
    $region25: #{tpu_custom_call.1} parent=1 // pred_fallthru
      _
    %v56 = vld [vmem:[#allocation3] sm:$0xff]
    %v57 = vld [vmem:[#allocation3 + $0x8] sm:$0xff]
    %v58 = vld [vmem:[#allocation6] sm:$0xff]
    %v59 = vld [vmem:[#allocation6 + $0x8] sm:$0xff]
    %v60 = vld [vmem:[#allocation6 + $0x10] sm:$0xff]
    %v61 = vld [vmem:[#allocation6 + $0x18] sm:$0xff]
    %v62 = vld [vmem:[#allocation6 + $0x20] sm:$0xff]
    %v63 = vld [vmem:[#allocation6 + $0x28] sm:$0xff]
    %v64 = vld [vmem:[#allocation6 + $0x30] sm:$0xff]
    %v65 = vld [vmem:[#allocation6 + $0x38] sm:$0xff]
    %v66 = vld [vmem:[#allocation6 + $0x40] sm:$0xff]
    %v67 = vld [vmem:[#allocation6 + $0x48] sm:$0xff]
    %v68 = vld [vmem:[#allocation6 + $0x50] sm:$0xff]
    %v69 = vld [vmem:[#allocation6 + $0x58] sm:$0xff]
    %v70 = vld [vmem:[#allocation6 + $0x60] sm:$0xff]
    %v71 = vld [vmem:[#allocation6 + $0x68] sm:$0xff]
    %v72 = vld [vmem:[#allocation6 + $0x70] sm:$0xff]
    %v73 = vld [vmem:[#allocation6 + $0x78] sm:$0xff]
    %v74 = vld [vmem:[#allocation6 + $0x80] sm:$0xff]
    %v75 = vld [vmem:[#allocation6 + $0x88] sm:$0xff]
    %v76 = vld [vmem:[#allocation6 + $0x90] sm:$0xff]
    %v77 = vld [vmem:[#allocation6 + $0x98] sm:$0xff]
    %v78 = vld [vmem:[#allocation6 + $0xa0] sm:$0xff]
    %v79 = vld [vmem:[#allocation6 + $0xa8] sm:$0xff]
    %v80 = vld [vmem:[#allocation6 + $0xb0] sm:$0xff]
    %v81 = vld [vmem:[#allocation6 + $0xb8] sm:$0xff]
    %v82 = vld [vmem:[#allocation6 + $0xc0] sm:$0xff]
    %v83 = vld [vmem:[#allocation6 + $0xc8] sm:$0xff]
    %v84 = vld [vmem:[#allocation6 + $0xd0] sm:$0xff]
    %v85 = vld [vmem:[#allocation6 + $0xd8] sm:$0xff]
    %v86 = vld [vmem:[#allocation6 + $0xe0] sm:$0xff]
    %v87 = vld [vmem:[#allocation6 + $0xe8] sm:$0xff]
    %v88 = vld [vmem:[#allocation6 + $0xf0] sm:$0xff]
    %v89 = vld [vmem:[#allocation6 + $0xf8] sm:$0xff]
    %v92 = vunpack.c.l.b16 %v56
    %v93 = vunpack.c.h.b16 %v56
    %v94 = vunpack.c.l.b16 %v57
    %v95 = vunpack.c.h.b16 %v57
    %v96 = vpack.c.b16 %v94, %v92
    %v97 = vpack.c.b16 %v95, %v93
    %v132 = vunpack.c.l.b16 %v58
    %v133 = vunpack.c.h.b16 %v58
    %v134 = vunpack.c.l.b16 %v59
    %v135 = vunpack.c.h.b16 %v59
    %v136 = vunpack.c.l.b16 %v60
    %v137 = vunpack.c.h.b16 %v60
    %v138 = vunpack.c.l.b16 %v61
    %v139 = vunpack.c.h.b16 %v61
    %v140 = vunpack.c.l.b16 %v62
    %v141 = vunpack.c.h.b16 %v62
    %v142 = vunpack.c.l.b16 %v63
    %v143 = vunpack.c.h.b16 %v63
    %v144 = vunpack.c.l.b16 %v64
    %v145 = vunpack.c.h.b16 %v64
    %v146 = vunpack.c.l.b16 %v65
    %v147 = vunpack.c.h.b16 %v65
    %v148 = vunpack.c.l.b16 %v66
    %v149 = vunpack.c.h.b16 %v66
    %v150 = vunpack.c.l.b16 %v67
    %v151 = vunpack.c.h.b16 %v67
    %v152 = vunpack.c.l.b16 %v68
    %v153 = vunpack.c.h.b16 %v68
    %v154 = vunpack.c.l.b16 %v69
    %v155 = vunpack.c.h.b16 %v69
    %v156 = vunpack.c.l.b16 %v70
    %v157 = vunpack.c.h.b16 %v70
    %v158 = vunpack.c.l.b16 %v71
    %v159 = vunpack.c.h.b16 %v71
    %v160 = vunpack.c.l.b16 %v72
    %v161 = vunpack.c.h.b16 %v72
    %v162 = vunpack.c.l.b16 %v73
    %v163 = vunpack.c.h.b16 %v73
    %v164 = vunpack.c.l.b16 %v74
    %v165 = vunpack.c.h.b16 %v74
    %v166 = vunpack.c.l.b16 %v75
    %v167 = vunpack.c.h.b16 %v75
    %v168 = vunpack.c.l.b16 %v76
    %v169 = vunpack.c.h.b16 %v76
    %v170 = vunpack.c.l.b16 %v77
    %v171 = vunpack.c.h.b16 %v77
    %v172 = vunpack.c.l.b16 %v78
    %v173 = vunpack.c.h.b16 %v78
    %v174 = vunpack.c.l.b16 %v79
    %v175 = vunpack.c.h.b16 %v79
    %v176 = vunpack.c.l.b16 %v80
    %v177 = vunpack.c.h.b16 %v80
    %v178 = vunpack.c.l.b16 %v81
    %v179 = vunpack.c.h.b16 %v81
    %v180 = vunpack.c.l.b16 %v82
    %v181 = vunpack.c.h.b16 %v82
    %v182 = vunpack.c.l.b16 %v83
    %v183 = vunpack.c.h.b16 %v83
    %v184 = vunpack.c.l.b16 %v84
    %v185 = vunpack.c.h.b16 %v84
    %v186 = vunpack.c.l.b16 %v85
    %v187 = vunpack.c.h.b16 %v85
    %v188 = vunpack.c.l.b16 %v86
    %v189 = vunpack.c.h.b16 %v86
    %v190 = vunpack.c.l.b16 %v87
    %v191 = vunpack.c.h.b16 %v87
    %v192 = vunpack.c.l.b16 %v88
    %v193 = vunpack.c.h.b16 %v88
    %v194 = vunpack.c.l.b16 %v89
    %v195 = vunpack.c.h.b16 %v89
    %v196 = vpack.c.b16 %v134, %v132
    %v197 = vpack.c.b16 %v135, %v133
    %v198 = vpack.c.b16 %v138, %v136
    %v199 = vpack.c.b16 %v139, %v137
    %v200 = vpack.c.b16 %v142, %v140
    %v201 = vpack.c.b16 %v143, %v141
    %v202 = vpack.c.b16 %v146, %v144
    %v203 = vpack.c.b16 %v147, %v145
    %v204 = vpack.c.b16 %v150, %v148
    %v205 = vpack.c.b16 %v151, %v149
    %v206 = vpack.c.b16 %v154, %v152
    %v207 = vpack.c.b16 %v155, %v153
    %v208 = vpack.c.b16 %v158, %v156
    %v209 = vpack.c.b16 %v159, %v157
    %v210 = vpack.c.b16 %v162, %v160
    %v211 = vpack.c.b16 %v163, %v161
    %v212 = vpack.c.b16 %v166, %v164
    %v213 = vpack.c.b16 %v167, %v165
    %v214 = vpack.c.b16 %v170, %v168
    %v215 = vpack.c.b16 %v171, %v169
    %v216 = vpack.c.b16 %v174, %v172
    %v217 = vpack.c.b16 %v175, %v173
    %v218 = vpack.c.b16 %v178, %v176
    %v219 = vpack.c.b16 %v179, %v177
    %v220 = vpack.c.b16 %v182, %v180
    %v221 = vpack.c.b16 %v183, %v181
    %v222 = vpack.c.b16 %v186, %v184
    %v223 = vpack.c.b16 %v187, %v185
    %v224 = vpack.c.b16 %v190, %v188
    %v225 = vpack.c.b16 %v191, %v189
    %v226 = vpack.c.b16 %v194, %v192
    %v227 = vpack.c.b16 %v195, %v193
    %260 = vmatprep.subr.bf16.mxu0 %v211
    %261 = vmatpush1.bf16.msra.mxu0 %v210
    %262 = vmatprep.subr.bf16.mxu0 %v209
    %263 = vmatpush1.bf16.msra.mxu0 %v208
    %264 = vmatprep.subr.bf16.mxu0 %v207
    %265 = vmatpush1.bf16.msra.mxu0 %v206
    %266 = vmatprep.subr.bf16.mxu0 %v205
    %267 = vmatpush1.bf16.msra.mxu0 %v204
    %268 = vmatprep.subr.bf16.mxu0 %v203
    %269 = vmatpush1.bf16.msra.mxu0 %v202
    %270 = vmatprep.subr.bf16.mxu0 %v201
    %271 = vmatpush1.bf16.msra.mxu0 %v200
    %272 = vmatprep.subr.bf16.mxu0 %v199
    %273 = vmatpush1.bf16.msra.mxu0 %v198
    %274 = vmatprep.subr.bf16.mxu0 %v197
    %275 = vmatpush1.bf16.msra.mxu0 %v196
    %276 = vmatprep.subr.bf16.mxu0 %v227
    %277 = vmatpush2.bf16.msra.mxu0 %v226
    %278 = vmatprep.subr.bf16.mxu0 %v225
    %279 = vmatpush2.bf16.msra.mxu0 %v224
    %280 = vmatprep.subr.bf16.mxu0 %v223
    %281 = vmatpush2.bf16.msra.mxu0 %v222
    %282 = vmatprep.subr.bf16.mxu0 %v221
    %283 = vmatpush2.bf16.msra.mxu0 %v220
    %284 = vmatprep.subr.bf16.mxu0 %v219
    %285 = vmatpush2.bf16.msra.mxu0 %v218
    %286 = vmatprep.subr.bf16.mxu0 %v217
    %287 = vmatpush2.bf16.msra.mxu0 %v216
    %288 = vmatprep.subr.bf16.mxu0 %v215
    %289 = vmatpush2.bf16.msra.mxu0 %v214
    %290 = vmatprep.subr.bf16.mxu0 %v213
    %291 = vmatpush2.bf16.msra.mxu0 %v212
    %292 = vmatprep.mubr.bf16.mxu0 %v97
    %293 = vmatmul.mubr.bf16.gmra.mxu0 %v96
    %v294 = vpop.f32.mrf.mxu0
    %v295 = vadd.f32 0.0, %v294
    %v296 = vpop.f32.mrf.mxu0
    %v297 = vadd.f32 0.0, %v296
    %v298 = vpop.f32.mrf.mxu0
    %v299 = vadd.f32 0.0, %v298
    %v300 = vpop.f32.mrf.mxu0
    %v301 = vadd.f32 0.0, %v300
    %302 = vdwg.mxu0
    %v303 = vmax.f32 %v295, 0.0
    %v304 = vmax.f32 %v297, 0.0
    %v305 = vmax.f32 %v299, 0.0
    %v306 = vmax.f32 %v301, 0.0
    %v307 = vpack.c.bf16 %v305, %v303
    %v308 = vpack.c.bf16 %v306, %v304
    %v309 = vld [vmem:[#allocation8] sm:$0xff]
    %v310 = vld [vmem:[#allocation8 + $0x8] sm:$0xff]
    %v311 = vld [vmem:[#allocation8 + $0x10] sm:$0xff]
    %v312 = vld [vmem:[#allocation8 + $0x18] sm:$0xff]
    %v313 = vld [vmem:[#allocation8 + $0x20] sm:$0xff]
    %v314 = vld [vmem:[#allocation8 + $0x28] sm:$0xff]
    %v315 = vld [vmem:[#allocation8 + $0x30] sm:$0xff]
    %v316 = vld [vmem:[#allocation8 + $0x38] sm:$0xff]
    %v317 = vld [vmem:[#allocation8 + $0x40] sm:$0xff]
    %v318 = vld [vmem:[#allocation8 + $0x48] sm:$0xff]
    %v319 = vld [vmem:[#allocation8 + $0x50] sm:$0xff]
    %v320 = vld [vmem:[#allocation8 + $0x58] sm:$0xff]
    %v321 = vld [vmem:[#allocation8 + $0x60] sm:$0xff]
    %v322 = vld [vmem:[#allocation8 + $0x68] sm:$0xff]
    %v323 = vld [vmem:[#allocation8 + $0x70] sm:$0xff]
    %v324 = vld [vmem:[#allocation8 + $0x78] sm:$0xff]
    %v325 = vld [vmem:[#allocation8 + $0x80] sm:$0xff]
    %v326 = vld [vmem:[#allocation8 + $0x88] sm:$0xff]
    %v327 = vld [vmem:[#allocation8 + $0x90] sm:$0xff]
    %v328 = vld [vmem:[#allocation8 + $0x98] sm:$0xff]
    %v329 = vld [vmem:[#allocation8 + $0xa0] sm:$0xff]
    %v330 = vld [vmem:[#allocation8 + $0xa8] sm:$0xff]
    %v331 = vld [vmem:[#allocation8 + $0xb0] sm:$0xff]
    %v332 = vld [vmem:[#allocation8 + $0xb8] sm:$0xff]
    %v333 = vld [vmem:[#allocation8 + $0xc0] sm:$0xff]
    %v334 = vld [vmem:[#allocation8 + $0xc8] sm:$0xff]
    %v335 = vld [vmem:[#allocation8 + $0xd0] sm:$0xff]
    %v336 = vld [vmem:[#allocation8 + $0xd8] sm:$0xff]
    %v337 = vld [vmem:[#allocation8 + $0xe0] sm:$0xff]
    %v338 = vld [vmem:[#allocation8 + $0xe8] sm:$0xff]
    %v339 = vld [vmem:[#allocation8 + $0xf0] sm:$0xff]
    %v340 = vld [vmem:[#allocation8 + $0xf8] sm:$0xff]
    %v373 = vunpack.c.l.b16 %v309
    %v374 = vunpack.c.h.b16 %v309
    %v375 = vunpack.c.l.b16 %v310
    %v376 = vunpack.c.h.b16 %v310
    %v377 = vunpack.c.l.b16 %v311
    %v378 = vunpack.c.h.b16 %v311
    %v379 = vunpack.c.l.b16 %v312
    %v380 = vunpack.c.h.b16 %v312
    %v381 = vunpack.c.l.b16 %v313
    %v382 = vunpack.c.h.b16 %v313
    %v383 = vunpack.c.l.b16 %v314
    %v384 = vunpack.c.h.b16 %v314
    %v385 = vunpack.c.l.b16 %v315
    %v386 = vunpack.c.h.b16 %v315
    %v387 = vunpack.c.l.b16 %v316
    %v388 = vunpack.c.h.b16 %v316
    %v389 = vunpack.c.l.b16 %v317
    %v390 = vunpack.c.h.b16 %v317
    %v391 = vunpack.c.l.b16 %v318
    %v392 = vunpack.c.h.b16 %v318
    %v393 = vunpack.c.l.b16 %v319
    %v394 = vunpack.c.h.b16 %v319
    %v395 = vunpack.c.l.b16 %v320
    %v396 = vunpack.c.h.b16 %v320
    %v397 = vunpack.c.l.b16 %v321
    %v398 = vunpack.c.h.b16 %v321
    %v399 = vunpack.c.l.b16 %v322
    %v400 = vunpack.c.h.b16 %v322
    %v401 = vunpack.c.l.b16 %v323
    %v402 = vunpack.c.h.b16 %v323
    %v403 = vunpack.c.l.b16 %v324
    %v404 = vunpack.c.h.b16 %v324
    %v405 = vunpack.c.l.b16 %v325
    %v406 = vunpack.c.h.b16 %v325
    %v407 = vunpack.c.l.b16 %v326
    %v408 = vunpack.c.h.b16 %v326
    %v409 = vunpack.c.l.b16 %v327
    %v410 = vunpack.c.h.b16 %v327
    %v411 = vunpack.c.l.b16 %v328
    %v412 = vunpack.c.h.b16 %v328
    %v413 = vunpack.c.l.b16 %v329
    %v414 = vunpack.c.h.b16 %v329
    %v415 = vunpack.c.l.b16 %v330
    %v416 = vunpack.c.h.b16 %v330
    %v417 = vunpack.c.l.b16 %v331
    %v418 = vunpack.c.h.b16 %v331
    %v419 = vunpack.c.l.b16 %v332
    %v420 = vunpack.c.h.b16 %v332
    %v421 = vunpack.c.l.b16 %v333
    %v422 = vunpack.c.h.b16 %v333
    %v423 = vunpack.c.l.b16 %v334
    %v424 = vunpack.c.h.b16 %v334
    %v425 = vunpack.c.l.b16 %v335
    %v426 = vunpack.c.h.b16 %v335
    %v427 = vunpack.c.l.b16 %v336
    %v428 = vunpack.c.h.b16 %v336
    %v429 = vunpack.c.l.b16 %v337
    %v430 = vunpack.c.h.b16 %v337
    %v431 = vunpack.c.l.b16 %v338
    %v432 = vunpack.c.h.b16 %v338
    %v433 = vunpack.c.l.b16 %v339
    %v434 = vunpack.c.h.b16 %v339
    %v435 = vunpack.c.l.b16 %v340
    %v436 = vunpack.c.h.b16 %v340
    %v437 = vpack.c.b16 %v375, %v373
    %v438 = vpack.c.b16 %v376, %v374
    %v439 = vpack.c.b16 %v379, %v377
    %v440 = vpack.c.b16 %v380, %v378
    %v441 = vpack.c.b16 %v383, %v381
    %v442 = vpack.c.b16 %v384, %v382
    %v443 = vpack.c.b16 %v387, %v385
    %v444 = vpack.c.b16 %v388, %v386
    %v445 = vpack.c.b16 %v391, %v389
    %v446 = vpack.c.b16 %v392, %v390
    %v447 = vpack.c.b16 %v395, %v393
    %v448 = vpack.c.b16 %v396, %v394
    %v449 = vpack.c.b16 %v399, %v397
    %v450 = vpack.c.b16 %v400, %v398
    %v451 = vpack.c.b16 %v403, %v401
    %v452 = vpack.c.b16 %v404, %v402
    %v453 = vpack.c.b16 %v407, %v405
    %v454 = vpack.c.b16 %v408, %v406
    %v455 = vpack.c.b16 %v411, %v409
    %v456 = vpack.c.b16 %v412, %v410
    %v457 = vpack.c.b16 %v415, %v413
    %v458 = vpack.c.b16 %v416, %v414
    %v459 = vpack.c.b16 %v419, %v417
    %v460 = vpack.c.b16 %v420, %v418
    %v461 = vpack.c.b16 %v423, %v421
    %v462 = vpack.c.b16 %v424, %v422
    %v463 = vpack.c.b16 %v427, %v425
    %v464 = vpack.c.b16 %v428, %v426
    %v465 = vpack.c.b16 %v431, %v429
    %v466 = vpack.c.b16 %v432, %v430
    %v467 = vpack.c.b16 %v435, %v433
    %v468 = vpack.c.b16 %v436, %v434
    %501 = vmatprep.subr.bf16.mxu0 %v452
    %502 = vmatpush1.bf16.msra.mxu0 %v451
    %503 = vmatprep.subr.bf16.mxu0 %v450
    %504 = vmatpush1.bf16.msra.mxu0 %v449
    %505 = vmatprep.subr.bf16.mxu0 %v448
    %506 = vmatpush1.bf16.msra.mxu0 %v447
    %507 = vmatprep.subr.bf16.mxu0 %v446
    %508 = vmatpush1.bf16.msra.mxu0 %v445
    %509 = vmatprep.subr.bf16.mxu0 %v444
    %510 = vmatpush1.bf16.msra.mxu0 %v443
    %511 = vmatprep.subr.bf16.mxu0 %v442
    %512 = vmatpush1.bf16.msra.mxu0 %v441
    %513 = vmatprep.subr.bf16.mxu0 %v440
    %514 = vmatpush1.bf16.msra.mxu0 %v439
    %515 = vmatprep.subr.bf16.mxu0 %v438
    %516 = vmatpush1.bf16.msra.mxu0 %v437
    %517 = vmatprep.subr.bf16.mxu0 %v468
    %518 = vmatpush2.bf16.msra.mxu0 %v467
    %519 = vmatprep.subr.bf16.mxu0 %v466
    %520 = vmatpush2.bf16.msra.mxu0 %v465
    %521 = vmatprep.subr.bf16.mxu0 %v464
    %522 = vmatpush2.bf16.msra.mxu0 %v463
    %523 = vmatprep.subr.bf16.mxu0 %v462
    %524 = vmatpush2.bf16.msra.mxu0 %v461
    %525 = vmatprep.subr.bf16.mxu0 %v460
    %526 = vmatpush2.bf16.msra.mxu0 %v459
    %527 = vmatprep.subr.bf16.mxu0 %v458
    %528 = vmatpush2.bf16.msra.mxu0 %v457
    %529 = vmatprep.subr.bf16.mxu0 %v456
    %530 = vmatpush2.bf16.msra.mxu0 %v455
    %531 = vmatprep.subr.bf16.mxu0 %v454
    %532 = vmatpush2.bf16.msra.mxu0 %v453
    %533 = vmatprep.mubr.bf16.mxu0 %v308
    %534 = vmatmul.mubr.bf16.gmra.mxu0 %v307
    %v535 = vpop.f32.mrf.mxu0
    %v536 = vadd.f32 0.0, %v535
    %v537 = vpop.f32.mrf.mxu0
    %v538 = vadd.f32 0.0, %v537
    %v539 = vpop.f32.mrf.mxu0
    %v540 = vadd.f32 0.0, %v539
    %v541 = vpop.f32.mrf.mxu0
    %v542 = vadd.f32 0.0, %v541
    %543 = vdwg.mxu0
    %p544 = scmp.eq.s32.totalorder 0, 0
    // Predicated region
    $region26: #{tpu_custom_call.1} parent=1 // pred_check
      %p545 = pneg %p544
    $region27: #{tpu_custom_call.1} parent=1 // pred_check_branch
      %547 = sbr.rel (%p545) target = $region29
    $region28: #{tpu_custom_call.1} parent=1 // pred_region
      %548 = vst [vmem:[#allocation2] sm:$0xff] %v536
      %549 = vst [vmem:[#allocation2 + $0x8] sm:$0xff] %v538
      %550 = vst [vmem:[#allocation2 + $0x10] sm:$0xff] %v540
      %551 = vst [vmem:[#allocation2 + $0x18] sm:$0xff] %v542
    $region29: #{tpu_custom_call.1} parent=1 // pred_fallthru
      _
    %p552 = scmp.gt.s32.totalorder 0, 0
    // Predicated region
    $region30: #{tpu_custom_call.1} parent=1 // pred_check
      %p553 = pneg %p552
    $region31: #{tpu_custom_call.1} parent=1 // pred_check_branch
      %555 = sbr.rel (%p553) target = $region33
    $region32: #{tpu_custom_call.1} parent=1 // pred_region
      %v556 = vld [vmem:[#allocation2] sm:$0xff]
      %v557 = vld [vmem:[#allocation2 + $0x8] sm:$0xff]
      %v558 = vld [vmem:[#allocation2 + $0x10] sm:$0xff]
      %v559 = vld [vmem:[#allocation2 + $0x18] sm:$0xff]
      %v560 = vadd.f32 %v556, %v536
      %v561 = vadd.f32 %v557, %v538
      %v562 = vadd.f32 %v558, %v540
      %v563 = vadd.f32 %v559, %v542
      %564 = vst [vmem:[#allocation2] sm:$0xff] %v560
      %565 = vst [vmem:[#allocation2 + $0x8] sm:$0xff] %v561
      %566 = vst [vmem:[#allocation2 + $0x10] sm:$0xff] %v562
      %567 = vst [vmem:[#allocation2 + $0x18] sm:$0xff] %v563
    $region33: #{tpu_custom_call.1} parent=1 // pred_fallthru
      _
    // Predicated region
    $region34: #{tpu_custom_call.1} parent=1 // pred_check
      %p568 = pneg %p544
    $region35: #{tpu_custom_call.1} parent=1 // pred_check_branch
      %570 = sbr.rel (%p568) target = $region37
    $region36: #{tpu_custom_call.1} parent=1 // pred_region
      %v571 = vld [vmem:[#allocation2] sm:$0xff]
      %v572 = vld [vmem:[#allocation2 + $0x8] sm:$0xff]
      %v573 = vld [vmem:[#allocation2 + $0x10] sm:$0xff]
      %v574 = vld [vmem:[#allocation2 + $0x18] sm:$0xff]
      %575 = vst [vmem:[#allocation9] sm:$0xff] %v571
      %576 = vst [vmem:[#allocation9 + $0x8] sm:$0xff] %v572
      %577 = vst [vmem:[#allocation9 + $0x10] sm:$0xff] %v573
      %578 = vst [vmem:[#allocation9 + $0x18] sm:$0xff] %v574
    $region37: #{tpu_custom_call.1} parent=1 // pred_fallthru
      _
    // Predicated region
    $region38: #{tpu_custom_call.1} parent=1 // pred_check
      _
    $region39: #{tpu_custom_call.1} parent=1 // pred_check_branch
      %580 = sbr.rel (0) target = $region41
    $region40: #{tpu_custom_call.1} parent=1 // pred_region
      %s582 = ssub.s32 512, 512
      %583 = vsyncadd [#allocation5], %s582
      %s584 = sshll.u32 [#allocation9], 4
      %s585 = int_to_ptr.vmem [resolvable:$true] %s584
      %590 = dma.vmem_to_hbm [thread:$0]  %s585, 512, %s3, [#allocation5], 256, 256, 16
    $region41: #{tpu_custom_call.1} parent=1 // pred_fallthru
      _
    // Predicated region
    $region42: #{tpu_custom_call.1} parent=1 // pred_check
      _
    $region43: #{tpu_custom_call.1} parent=1 // pred_check_branch
      %592 = sbr.rel (0) target = $region45
    $region44: #{tpu_custom_call.1} parent=1 // pred_region
      %593 = dma.done [#allocation5], 512
    $region45: #{tpu_custom_call.1} parent=1 // pred_fallthru
      _
    %594 = vsyncpa [#allocation4], 1
    %595 = vsyncpa [#allocation7], 1
    %596 = vsyncpa [#allocation5], 1

</llo_original>
